<compile_context>
chip_gen: v5e
topology: v5e:2x2
jax: 0.10.0
libtpu: 0.0.40
codegen_flags: <defaults>
</compile_context>

<pallas_src>
import functools

import jax
import jax.numpy as jnp
from jax.experimental import pallas as pl
from jax.experimental.pallas import tpu as pltpu


def _round_up(x, m):
    return ((x + m - 1) // m) * m


def mlp_critic_kernel(x_ref, w1_ref, b1_ref, w2_ref, b2_ref, w3_ref, b3_ref, out_ref):
    # x:  (obs_dim, TB) bf16        w1: (H1, obs_dim) bf16   b1: (H1, 1) f32
    # w2: (H2, H1)      bf16        b2: (H2, 1) f32
    # w3: (H2, 1)       f32         b3: (1, 1)  f32
    # out: (1, TB) f32

    # Hidden layer 1: Linear + Tanh  (MXU, f32 accumulation)
    h1 = jnp.tanh(
        jnp.dot(w1_ref[...], x_ref[...], preferred_element_type=jnp.float32)
        + b1_ref[...]
    )

    # Hidden layer 2: Linear + Tanh  (MXU, f32 accumulation)
    h2 = jnp.tanh(
        jnp.dot(w2_ref[...], h1.astype(jnp.bfloat16),
                preferred_element_type=jnp.float32)
        + b2_ref[...]
    )

    # Output layer (width 1): VPU broadcast-multiply + sublane reduction (XLU),
    # bias folded in. Avoids a 1-column MXU matmul and keeps output lane-dense.
    v = jnp.sum(w3_ref[...] * h2, axis=0, keepdims=True) + b3_ref[...]
    out_ref[...] = v.astype(out_ref.dtype)


@functools.partial(jax.jit, static_argnames=("tile_b",))
def mlp_critic_forward(obs, params, tile_b=2048):
    """Fused MLP critic forward. obs: (B, obs_dim) f32. Returns (B,) f32.

    params (kernel layout):
      w1: (H1, obs_dim), b1: (H1, 1), w2: (H2, H1), b2: (H2, 1),
      w3: (H2, 1),       b3: (1, 1)
    """
    w1, b1, w2, b2, w3, b3 = params
    B, obs_dim = obs.shape

    # Batch tile: multiple of 128 lanes, capped at tile_b (sized so double-
    # buffered tiles + activations fit comfortably even in v7x's 64 MiB VMEM /
    # v5e's 16 MiB default scoped limit — at TB=2048 the whole working set is
    # well under 1 MiB, so no vmem_limit_bytes override is needed).
    TB = min(tile_b, _round_up(B, 128))
    B_pad = _round_up(B, TB)

    # Feature-major, bf16, zero-padded along batch.
    x = obs.astype(jnp.bfloat16).T                      # (obs_dim, B)
    x = jnp.pad(x, ((0, 0), (0, B_pad - B)))            # (obs_dim, B_pad)
    w1b = w1.astype(jnp.bfloat16)
    w2b = w2.astype(jnp.bfloat16)

    const2d = lambda i: (0, 0)

    out = pl.pallas_call(
        mlp_critic_kernel,
        out_shape=jax.ShapeDtypeStruct((1, B_pad), jnp.float32),
        grid=(B_pad // TB,),
        in_specs=[
            pl.BlockSpec((obs_dim, TB), lambda i: (0, i)),   # obs tile, pipelined
            pl.BlockSpec(w1b.shape, const2d),                # weights resident
            pl.BlockSpec(b1.shape, const2d),
            pl.BlockSpec(w2b.shape, const2d),
            pl.BlockSpec(b2.shape, const2d),
            pl.BlockSpec(w3.shape, const2d),
            pl.BlockSpec(b3.shape, const2d),
        ],
        out_specs=pl.BlockSpec((1, TB), lambda i: (0, i)),
        compiler_params=pltpu.CompilerParams(
            dimension_semantics=("parallel",),               # megacore on v7x
        ),
    )(x, w1b, b1, w2b, b2, w3, b3)

    # Lane-dense (1, B_pad) output; slice off batch padding -> (B,)
    return out[0, :B]


def init_linear(key, fan_in, fan_out):
    """Mimics torch.nn.Linear default init (uniform +-1/sqrt(fan_in)).

    Returns W of shape (fan_out, fan_in) (PyTorch layout) and b of (fan_out, 1)
    (column vector for the feature-major kernel layout)."""
    kw, kb = jax.random.split(key)
    bound = 1.0 / jnp.sqrt(fan_in)
    w = jax.random.uniform(kw, (fan_out, fan_in), jnp.float32, -bound, bound)
    b = jax.random.uniform(kb, (fan_out, 1), jnp.float32, -bound, bound)
    return w, b


def make_params(key, obs_dim, hidden_sizes):
    """Builds params in kernel layout: (w1, b1, w2, b2, w3, b3).

    w3 is stored as (H2, 1) (i.e. the transposed final Linear weight)."""
    sizes = [obs_dim] + list(hidden_sizes) + [1]
    keys = jax.random.split(key, len(sizes) - 1)
    ws, bs = [], []
    for k, din, dout in zip(keys, sizes[:-1], sizes[1:]):
        w, b = init_linear(k, din, dout)
        ws.append(w)
        bs.append(b)
    w1, w2, w3 = ws
    b1, b2, b3 = bs
    return (w1, b1, w2, b2, w3.T, b3)   # w3.T: (H2, 1); b3: (1, 1)


def reference_forward_f32(obs, params):
    """Pure-f32 reference of the module semantics."""
    w1, b1, w2, b2, w3, b3 = params
    h1 = jnp.tanh(obs @ w1.T + b1.T)
    h2 = jnp.tanh(h1 @ w2.T + b2.T)
    v = h2 @ w3 + b3.T
    return jnp.squeeze(v, axis=-1)


def reference_forward_bf16(obs, params):
    """Reference mirroring the kernel's bf16-input / f32-accumulate numerics."""
    w1, b1, w2, b2, w3, b3 = params
    f32 = lambda a: a.astype(jnp.bfloat16).astype(jnp.float32)
    h1 = jnp.tanh(f32(obs) @ f32(w1).T + b1.T)
    h2 = jnp.tanh(f32(h1) @ f32(w2).T + b2.T)
    v = h2 @ w3 + b3.T
    return jnp.squeeze(v, axis=-1)


if __name__ == "__main__":
    key = jax.random.PRNGKey(0)
    k_obs, k_params = jax.random.split(key)

    batch = 8
    obs_dim = 16
    hidden_sizes = (32, 32)

    obs = jax.random.normal(k_obs, (batch, obs_dim), jnp.float32)
    params = make_params(k_params, obs_dim, hidden_sizes)

    v = mlp_critic_forward(obs, params)
    v = jax.block_until_ready(v)
    assert v.shape == (batch,), v.shape

    # Tight check against a reference with matching bf16-input numerics.
    v_ref_bf16 = reference_forward_bf16(obs, params)
    assert jnp.allclose(v, v_ref_bf16, atol=1e-4, rtol=1e-4), (v, v_ref_bf16)

    # Loose check against the pure-f32 module semantics (bf16 cast tolerance).
    v_ref_f32 = reference_forward_f32(obs, params)
    assert jnp.allclose(v, v_ref_f32, atol=2e-2, rtol=2e-2), (v, v_ref_f32)

    print("KERNEL_OK")
</pallas_src>

<mosaic_0001>
module attributes {stable_mosaic.version = 11 : i64} {
  func.func @mlp_critic_kernel(%arg0: i32, %arg1: memref<16x128xbf16, #tpu.memory_space<vmem>>, %arg2: memref<32x16xbf16, #tpu.memory_space<vmem>>, %arg3: memref<32x1xf32, #tpu.memory_space<vmem>>, %arg4: memref<32x32xbf16, #tpu.memory_space<vmem>>, %arg5: memref<32x1xf32, #tpu.memory_space<vmem>>, %arg6: memref<32x1xf32, #tpu.memory_space<vmem>>, %arg7: memref<1x1xf32, #tpu.memory_space<vmem>>, %arg8: memref<1x128xf32, #tpu.memory_space<vmem>>) attributes {dimension_semantics = [#tpu.dimension_semantics<parallel>], iteration_bounds = array<i64: 1>, scalar_prefetch = 0 : i64, scratch_operands = 0 : i64, tpu.core_type = #tpu.core_type<tc>, window_params = [{transform_indices = @transform_0, window_bounds = array<i64: 16, 128>}, {pipeline_mode = #tpu.pipeline_mode<synchronous>, transform_indices = @transform_1, window_bounds = array<i64: 32, 16>}, {pipeline_mode = #tpu.pipeline_mode<synchronous>, transform_indices = @transform_2, window_bounds = array<i64: 32, 1>}, {pipeline_mode = #tpu.pipeline_mode<synchronous>, transform_indices = @transform_3, window_bounds = array<i64: 32, 32>}, {pipeline_mode = #tpu.pipeline_mode<synchronous>, transform_indices = @transform_4, window_bounds = array<i64: 32, 1>}, {pipeline_mode = #tpu.pipeline_mode<synchronous>, transform_indices = @transform_5, window_bounds = array<i64: 32, 1>}, {pipeline_mode = #tpu.pipeline_mode<synchronous>, transform_indices = @transform_6, window_bounds = array<i64: 1, 1>}, {transform_indices = @transform_7, window_bounds = array<i64: 1, 128>}]} {
    %c0 = arith.constant 0 : index
    %c0_0 = arith.constant 0 : index
    %0 = vector.load %arg2[%c0, %c0_0] : memref<32x16xbf16, #tpu.memory_space<vmem>>, vector<32x16xbf16>
    %c0_1 = arith.constant 0 : index
    %c0_2 = arith.constant 0 : index
    %1 = vector.load %arg1[%c0_1, %c0_2] : memref<16x128xbf16, #tpu.memory_space<vmem>>, vector<16x128xbf16>
    %cst = arith.constant dense<0.000000e+00> : vector<32x128xf32>
    %2 = tpu.matmul %0, %1, %cst {dimension_numbers = #tpu.dot_dimension_numbers<[1], [0], [0], [1], [0, 0, 1, 1], [], []>} : vector<32x16xbf16>, vector<16x128xbf16>, vector<32x128xf32> -> vector<32x128xf32>
    %c0_3 = arith.constant 0 : index
    %c0_4 = arith.constant 0 : index
    %3 = vector.load %arg3[%c0_3, %c0_4] : memref<32x1xf32, #tpu.memory_space<vmem>>, vector<32x1xf32>
    %4 = vector.broadcast %3 : vector<32x1xf32> to vector<32x128xf32>
    %5 = arith.addf %2, %4 : vector<32x128xf32>
    %6 = math.tanh %5 : vector<32x128xf32>
    %c0_5 = arith.constant 0 : index
    %c0_6 = arith.constant 0 : index
    %7 = vector.load %arg4[%c0_5, %c0_6] : memref<32x32xbf16, #tpu.memory_space<vmem>>, vector<32x32xbf16>
    %8 = arith.truncf %6 : vector<32x128xf32> to vector<32x128xbf16>
    %cst_7 = arith.constant dense<0.000000e+00> : vector<32x128xf32>
    %9 = tpu.matmul %7, %8, %cst_7 {dimension_numbers = #tpu.dot_dimension_numbers<[1], [0], [0], [1], [0, 0, 1, 1], [], []>} : vector<32x32xbf16>, vector<32x128xbf16>, vector<32x128xf32> -> vector<32x128xf32>
    %c0_8 = arith.constant 0 : index
    %c0_9 = arith.constant 0 : index
    %10 = vector.load %arg5[%c0_8, %c0_9] : memref<32x1xf32, #tpu.memory_space<vmem>>, vector<32x1xf32>
    %11 = vector.broadcast %10 : vector<32x1xf32> to vector<32x128xf32>
    %12 = arith.addf %9, %11 : vector<32x128xf32>
    %13 = math.tanh %12 : vector<32x128xf32>
    %c0_10 = arith.constant 0 : index
    %c0_11 = arith.constant 0 : index
    %14 = vector.load %arg6[%c0_10, %c0_11] : memref<32x1xf32, #tpu.memory_space<vmem>>, vector<32x1xf32>
    %15 = vector.broadcast %14 : vector<32x1xf32> to vector<32x128xf32>
    %16 = arith.mulf %15, %13 : vector<32x128xf32>
    %cst_12 = arith.constant dense<0.000000e+00> : vector<128xf32>
    %17 = vector.multi_reduction <add>, %16, %cst_12 [0] : vector<32x128xf32> to vector<128xf32>
    %18 = vector.shape_cast %17 : vector<128xf32> to vector<1x128xf32>
    %c0_13 = arith.constant 0 : index
    %c0_14 = arith.constant 0 : index
    %19 = vector.load %arg7[%c0_13, %c0_14] : memref<1x1xf32, #tpu.memory_space<vmem>>, vector<1x1xf32>
    %20 = vector.broadcast %19 : vector<1x1xf32> to vector<1x128xf32>
    %21 = arith.addf %18, %20 : vector<1x128xf32>
    %c0_15 = arith.constant 0 : index
    %c0_16 = arith.constant 0 : index
    %22 = vector.load %arg8[%c0_15, %c0_16] : memref<1x128xf32, #tpu.memory_space<vmem>>, vector<1x128xf32>
    tpu.vector_store %arg8[%c0_15, %c0_16], %21 {strides = array<i32>} : memref<1x128xf32, #tpu.memory_space<vmem>>, vector<1x128xf32>,
    return
  }
  func.func @transform_0(%arg0: i32) -> (i32, i32) {
    %c0_i32 = arith.constant 0 : i32
    %c0_i32_0 = arith.constant 0 : i32
    return %c0_i32, %arg0 : i32, i32
  }
  func.func @transform_1(%arg0: i32) -> (i32, i32) {
    %c0_i32 = arith.constant 0 : i32
    %c0_i32_0 = arith.constant 0 : i32
    %c0_i32_1 = arith.constant 0 : i32
    return %c0_i32, %c0_i32_0 : i32, i32
  }
  func.func @transform_2(%arg0: i32) -> (i32, i32) {
    %c0_i32 = arith.constant 0 : i32
    %c0_i32_0 = arith.constant 0 : i32
    %c0_i32_1 = arith.constant 0 : i32
    return %c0_i32, %c0_i32_0 : i32, i32
  }
  func.func @transform_3(%arg0: i32) -> (i32, i32) {
    %c0_i32 = arith.constant 0 : i32
    %c0_i32_0 = arith.constant 0 : i32
    %c0_i32_1 = arith.constant 0 : i32
    return %c0_i32, %c0_i32_0 : i32, i32
  }
  func.func @transform_4(%arg0: i32) -> (i32, i32) {
    %c0_i32 = arith.constant 0 : i32
    %c0_i32_0 = arith.constant 0 : i32
    %c0_i32_1 = arith.constant 0 : i32
    return %c0_i32, %c0_i32_0 : i32, i32
  }
  func.func @transform_5(%arg0: i32) -> (i32, i32) {
    %c0_i32 = arith.constant 0 : i32
    %c0_i32_0 = arith.constant 0 : i32
    %c0_i32_1 = arith.constant 0 : i32
    return %c0_i32, %c0_i32_0 : i32, i32
  }
  func.func @transform_6(%arg0: i32) -> (i32, i32) {
    %c0_i32 = arith.constant 0 : i32
    %c0_i32_0 = arith.constant 0 : i32
    %c0_i32_1 = arith.constant 0 : i32
    return %c0_i32, %c0_i32_0 : i32, i32
  }
  func.func @transform_7(%arg0: i32) -> (i32, i32) {
    %c0_i32 = arith.constant 0 : i32
    %c0_i32_0 = arith.constant 0 : i32
    return %c0_i32, %arg0 : i32, i32
  }
}

</mosaic_0001>

<llo_original>
// kernel: mlp_critic_forward.1
$region0: #{mlp_critic_forward.1}
  #allocation0 [shape = 'u32[]', space=smem, size = 0x4, offset = 0x4, fixed_abs, tag = 'smem constant byte address 0x4 - core index']
  #allocation1 [shape = 'u32[72,128]{1,0:T(1,128)}', space=vmem, size = 0x9000, scoped, tag = 'internal scratch']
  #allocation2 [shape = 'f32[1,1]{1,0:T(1,128)S(1)}', space=vmem, size = 0x200, scoped, tag = 'scoped memory for mlp_critic_forward.1']
  %s0 = inlined_call_operand.vmem [shape: bf16[16,128], index: 0, kind: input, shape index: {}]
  %s1 = inlined_call_operand.vmem [shape: bf16[32,16], index: 1, kind: input, shape index: {}]
  %s2 = inlined_call_operand.vmem [shape: f32[32,1], index: 2, kind: input, shape index: {}]
  %s3 = inlined_call_operand.vmem [shape: bf16[32,32], index: 3, kind: input, shape index: {}]
  %s4 = inlined_call_operand.vmem [shape: f32[32,1], index: 4, kind: input, shape index: {}]
  %s5 = inlined_call_operand.vmem [shape: f32[32,1], index: 5, kind: input, shape index: {}]
  %s6 = inlined_call_operand.<no memory space> [shape: f32[1,1], index: 6, kind: input, shape index: {}]
  %s7 = inlined_call_operand.vmem [shape: f32[1,128], index: 7, kind: output, shape index: {}]
  %s8 = sld [smem:[#allocation0]]
  $region38: #{mlp_critic_forward.1} parent=0
    _
  %s10 = ssub.s32 1, %s8
  %s11 = scalar_select 0, %s10, %s8
  %v12 = vstv %s6
  %13 = vst [vmem:[#allocation2] sm:$0x1] %v12
  // Predicated region
  $region2: #{mlp_critic_forward.1} parent=0 // pred_check
    _
  $region3: #{mlp_critic_forward.1} parent=0 // pred_check_branch
    %15 = sbr.rel (0) target = $region5
  $region4: #{mlp_critic_forward.1} parent=0 // pred_region
    _
  $region5: #{mlp_critic_forward.1} parent=0 // pred_fallthru
    _
  // Predicated region
  $region6: #{mlp_critic_forward.1} parent=0 // pred_check
    _
  $region7: #{mlp_critic_forward.1} parent=0 // pred_check_branch
    %17 = sbr.rel (0) target = $region9
  $region8: #{mlp_critic_forward.1} parent=0 // pred_region
    _
  $region9: #{mlp_critic_forward.1} parent=0 // pred_fallthru
    _
  // Predicated region
  $region10: #{mlp_critic_forward.1} parent=0 // pred_check
    _
  $region11: #{mlp_critic_forward.1} parent=0 // pred_check_branch
    %19 = sbr.rel (0) target = $region13
  $region12: #{mlp_critic_forward.1} parent=0 // pred_region
    _
  $region13: #{mlp_critic_forward.1} parent=0 // pred_fallthru
    _
  // Predicated region
  $region14: #{mlp_critic_forward.1} parent=0 // pred_check
    _
  $region15: #{mlp_critic_forward.1} parent=0 // pred_check_branch
    %21 = sbr.rel (0) target = $region17
  $region16: #{mlp_critic_forward.1} parent=0 // pred_region
    _
  $region17: #{mlp_critic_forward.1} parent=0 // pred_fallthru
    _
  // Predicated region
  $region18: #{mlp_critic_forward.1} parent=0 // pred_check
    _
  $region19: #{mlp_critic_forward.1} parent=0 // pred_check_branch
    %23 = sbr.rel (0) target = $region21
  $region20: #{mlp_critic_forward.1} parent=0 // pred_region
    _
  $region21: #{mlp_critic_forward.1} parent=0 // pred_fallthru
    _
  // Predicated region
  $region22: #{mlp_critic_forward.1} parent=0 // pred_check
    _
  $region23: #{mlp_critic_forward.1} parent=0 // pred_check_branch
    %25 = sbr.rel (0) target = $region25
  $region24: #{mlp_critic_forward.1} parent=0 // pred_region
    _
  $region25: #{mlp_critic_forward.1} parent=0 // pred_fallthru
    _
  // Predicated region
  $region26: #{mlp_critic_forward.1} parent=0 // pred_check
    _
  $region27: #{mlp_critic_forward.1} parent=0 // pred_check_branch
    %27 = sbr.rel (0) target = $region29
  $region28: #{mlp_critic_forward.1} parent=0 // pred_region
    _
  $region29: #{mlp_critic_forward.1} parent=0 // pred_fallthru
    _
  %v29 = vld [vmem:[%s1] sm:$0xf]
  %v30 = vld [vmem:[%s1 + $0x4] sm:$0xf]
  %v31 = vld [vmem:[%s1 + $0x8] sm:$0xf]
  %v32 = vld [vmem:[%s1 + $0xc] sm:$0xf]
  %v33 = vld [vmem:[%s0] sm:$0xf]
  %v34 = vld [vmem:[%s0 + $0x4] sm:$0xf]
  %v35 = vld [vmem:[%s2] sm:$0xff]
  %v36 = vld [vmem:[%s2 + $0x8] sm:$0xff]
  %v37 = vld [vmem:[%s2 + $0x10] sm:$0xff]
  %v38 = vld [vmem:[%s2 + $0x18] sm:$0xff]
  %40 = vset.pattern.permute.xlu0 0
  %41 = vperm.xlu0 %40, %v35
  %v42 = vpop.permute.xlu0 %41
  %45 = vset.pattern.permute.xlu0 0
  %46 = vperm.xlu0 %45, %v36
  %v47 = vpop.permute.xlu0 %46
  %50 = vset.pattern.permute.xlu0 0
  %51 = vperm.xlu0 %50, %v37
  %v52 = vpop.permute.xlu0 %51
  %55 = vset.pattern.permute.xlu0 0
  %56 = vperm.xlu0 %55, %v38
  %v57 = vpop.permute.xlu0 %56
  %v63 = vunpack.c.l.b16 %v29
  %v64 = vunpack.c.l.b16 %v30
  %v65 = vunpack.c.l.b16 %v31
  %v66 = vunpack.c.l.b16 %v32
  %v67 = vpack.c.b16 %v64, %v63
  %v68 = vpack.c.b16 %v66, %v65
  %v71 = vunpack.c.l.b16 %v33
  %v72 = vunpack.c.l.b16 %v34
  %v73 = vpack.c.b16 %v72, %v71
  %vm75 = vcmask 130048
  %v77 = vsel %vm75, %v67, 0
  %v80 = vsel %vm75, %v68, 0
  %82 = vmatpush.bf16.msra.mxu0 0
  %83 = vmatpush.bf16.msra.mxu0 0
  %84 = vmatpush.bf16.msra.mxu0 0
  %85 = vmatpush.bf16.msra.mxu0 0
  %86 = vmatpush.bf16.msra.mxu0 0
  %87 = vmatpush.bf16.msra.mxu0 0
  %88 = vmatpush.bf16.msra.mxu0 0
  %89 = vmatpush.bf16.msra.mxu0 %v73
  %90 = vmatmul.bf16.gmra.mxu0 %v77
  %v91 = vpop.f32.mrf.mxu0
  %v92 = vadd.f32 %v42, %v91
  %v93 = vpop.f32.mrf.mxu0
  %v94 = vadd.f32 %v47, %v93
  %95 = vmatmul.bf16.gmra.mxu0 %v80
  %v96 = vpop.f32.mrf.mxu0
  %v97 = vadd.f32 %v52, %v96
  %v98 = vpop.f32.mrf.mxu0
  %v99 = vadd.f32 %v57, %v98
  %100 = vdwg.mxu0
  %v101 = vtanh.pop %v92
  %v102 = vtanh.pop %v94
  %v103 = vtanh.pop %v97
  %v104 = vtanh.pop %v99
  %v105 = vld [vmem:[%s3] sm:$0xf]
  %v106 = vld [vmem:[%s3 + $0x4] sm:$0xf]
  %v107 = vld [vmem:[%s3 + $0x8] sm:$0xf]
  %v108 = vld [vmem:[%s3 + $0xc] sm:$0xf]
  %v109 = vpack.c.bf16 %v102, %v101
  %v110 = vpack.c.bf16 %v104, %v103
  %v111 = vld [vmem:[%s4] sm:$0xff]
  %v112 = vld [vmem:[%s4 + $0x8] sm:$0xff]
  %v113 = vld [vmem:[%s4 + $0x10] sm:$0xff]
  %v114 = vld [vmem:[%s4 + $0x18] sm:$0xff]
  %116 = vset.pattern.permute.xlu0 0
  %117 = vperm.xlu0 %116, %v111
  %v118 = vpop.permute.xlu0 %117
  %121 = vset.pattern.permute.xlu0 0
  %122 = vperm.xlu0 %121, %v112
  %v123 = vpop.permute.xlu0 %122
  %126 = vset.pattern.permute.xlu0 0
  %127 = vperm.xlu0 %126, %v113
  %v128 = vpop.permute.xlu0 %127
  %131 = vset.pattern.permute.xlu0 0
  %132 = vperm.xlu0 %131, %v114
  %v133 = vpop.permute.xlu0 %132
  %v139 = vunpack.c.l.b16 %v105
  %v140 = vunpack.c.l.b16 %v106
  %v141 = vunpack.c.l.b16 %v107
  %v142 = vunpack.c.l.b16 %v108
  %v143 = vpack.c.b16 %v140, %v139
  %v144 = vpack.c.b16 %v142, %v141
  %vm145 = vcmask 261120
  %v147 = vsel %vm145, %v143, 0
  %v150 = vsel %vm145, %v144, 0
  %152 = vmatpush.bf16.msra.mxu0 0
  %153 = vmatpush.bf16.msra.mxu0 0
  %154 = vmatpush.bf16.msra.mxu0 0
  %155 = vmatpush.bf16.msra.mxu0 0
  %156 = vmatpush.bf16.msra.mxu0 0
  %157 = vmatpush.bf16.msra.mxu0 0
  %158 = vmatpush.bf16.msra.mxu0 %v110
  %159 = vmatpush.bf16.msra.mxu0 %v109
  %160 = vmatmul.bf16.gmra.mxu0 %v147
  %v161 = vpop.f32.mrf.mxu0
  %v162 = vadd.f32 %v118, %v161
  %v163 = vpop.f32.mrf.mxu0
  %v164 = vadd.f32 %v123, %v163
  %165 = vmatmul.bf16.gmra.mxu0 %v150
  %v166 = vpop.f32.mrf.mxu0
  %v167 = vadd.f32 %v128, %v166
  %v168 = vpop.f32.mrf.mxu0
  %v169 = vadd.f32 %v133, %v168
  %170 = vdwg.mxu0
  %v171 = vtanh.pop %v162
  %v172 = vtanh.pop %v164
  %v173 = vtanh.pop %v167
  %v174 = vtanh.pop %v169
  %v175 = vld [vmem:[%s5] sm:$0xff]
  %v176 = vld [vmem:[%s5 + $0x8] sm:$0xff]
  %v177 = vld [vmem:[%s5 + $0x10] sm:$0xff]
  %v178 = vld [vmem:[%s5 + $0x18] sm:$0xff]
  %180 = vset.pattern.permute.xlu0 0
  %181 = vperm.xlu0 %180, %v175
  %v182 = vpop.permute.xlu0 %181
  %185 = vset.pattern.permute.xlu0 0
  %186 = vperm.xlu0 %185, %v176
  %v187 = vpop.permute.xlu0 %186
  %190 = vset.pattern.permute.xlu0 0
  %191 = vperm.xlu0 %190, %v177
  %v192 = vpop.permute.xlu0 %191
  %195 = vset.pattern.permute.xlu0 0
  %196 = vperm.xlu0 %195, %v178
  %v197 = vpop.permute.xlu0 %196
  %v199 = vmul.f32 %v182, %v171
  %v200 = vmul.f32 %v187, %v172
  %v201 = vmul.f32 %v192, %v173
  %v202 = vmul.f32 %v197, %v174
  %v203 = vadd.f32 %v199, %v200
  %v204 = vadd.f32 %v203, %v201
  %v205 = vadd.f32 %v204, %v202
  %v206 = vrot.slane %v205, 4
  %v207 = vadd.f32 %v205, %v206
  %v208 = vrot.slane %v207, 2
  %v209 = vadd.f32 %v207, %v208
  %v210 = vrot.slane %v209, 1
  %v211 = vadd.f32 %v209, %v210
  %v212 = vld [vmem:[#allocation2] sm:$0x1]
  %214 = vset.pattern.permute.xlu0 0
  %215 = vperm.xlu0 %214, %v212
  %v216 = vpop.permute.xlu0 %215
  %v218 = vperm.slane %v216, 0
  %v219 = vadd.f32 %v211, %v218
  %220 = vst [vmem:[%s7] sm:$0x1] %v219
  // Predicated region
  $region30: #{mlp_critic_forward.1} parent=0 // pred_check
    _
  $region31: #{mlp_critic_forward.1} parent=0 // pred_check_branch
    %222 = sbr.rel (0) target = $region33
  $region32: #{mlp_critic_forward.1} parent=0 // pred_region
    _
  $region33: #{mlp_critic_forward.1} parent=0 // pred_fallthru
    _
  // Predicated region
  $region34: #{mlp_critic_forward.1} parent=0 // pred_check
    _
  $region35: #{mlp_critic_forward.1} parent=0 // pred_check_branch
    %224 = sbr.rel (0) target = $region37
  $region36: #{mlp_critic_forward.1} parent=0 // pred_region
    _
  $region37: #{mlp_critic_forward.1} parent=0 // pred_fallthru
    _

</llo_original>
